<compile_context>
chip_gen: v7x
topology: tpu7x:2x2x1
jax: 0.10.0
libtpu: 0.0.40
codegen_flags: <defaults>
</compile_context>

<pallas_src>
import functools
import math

import jax
import jax.numpy as jnp
from jax.experimental import pallas as pl
from jax.experimental.pallas import tpu as pltpu


SEQ_ALIGN = 128   # pad the token dim to a multiple of this for clean tiling


def _pick_tile(n, candidates):
    for c in candidates:
        if c <= n and n % c == 0:
            return c
    return n


# ----------------------------------------------------------------------------
# Tiled matmul (optionally with fused residual add in the epilogue)
# ----------------------------------------------------------------------------

def _matmul_kernel(a_ref, b_ref, o_ref, acc_ref):
    @pl.when(pl.program_id(2) == 0)
    def _():
        acc_ref[...] = jnp.zeros_like(acc_ref)

    acc_ref[...] += jnp.dot(a_ref[...], b_ref[...],
                            preferred_element_type=jnp.float32)

    @pl.when(pl.program_id(2) == pl.num_programs(2) - 1)
    def _():
        o_ref[...] = acc_ref[...].astype(o_ref.dtype)


def _matmul_residual_kernel(a_ref, b_ref, r_ref, o_ref, acc_ref):
    @pl.when(pl.program_id(2) == 0)
    def _():
        acc_ref[...] = jnp.zeros_like(acc_ref)

    acc_ref[...] += jnp.dot(a_ref[...], b_ref[...],
                            preferred_element_type=jnp.float32)

    @pl.when(pl.program_id(2) == pl.num_programs(2) - 1)
    def _():
        o_ref[...] = (acc_ref[...]
                      + r_ref[...].astype(jnp.float32)).astype(o_ref.dtype)


def pallas_matmul(a, b, residual=None, out_dtype=jnp.bfloat16):
    """a (M,K) @ b (K,N) [+ residual (M,N)] -> (M,N), bf16 in / f32 acc."""
    M, K = a.shape
    K2, N = b.shape
    assert K == K2
    tm = _pick_tile(M, (256, 128, 64, 32, 16, 8))
    tn = _pick_tile(N, (512, 256, 128))
    tk = _pick_tile(K, (512, 256, 128))
    grid = (M // tm, N // tn, K // tk)

    a_spec = pl.BlockSpec((tm, tk), lambda i, j, k: (i, k))
    b_spec = pl.BlockSpec((tk, tn), lambda i, j, k: (k, j))
    o_spec = pl.BlockSpec((tm, tn), lambda i, j, k: (i, j))
    params = pltpu.CompilerParams(
        dimension_semantics=("parallel", "parallel", "arbitrary"))
    scratch = [pltpu.VMEM((tm, tn), jnp.float32)]

    if residual is None:
        return pl.pallas_call(
            _matmul_kernel,
            out_shape=jax.ShapeDtypeStruct((M, N), out_dtype),
            grid=grid,
            in_specs=[a_spec, b_spec],
            out_specs=o_spec,
            scratch_shapes=scratch,
            compiler_params=params,
        )(a, b)

    r_spec = pl.BlockSpec((tm, tn), lambda i, j, k: (i, j))
    return pl.pallas_call(
        _matmul_residual_kernel,
        out_shape=jax.ShapeDtypeStruct((M, N), out_dtype),
        grid=grid,
        in_specs=[a_spec, b_spec, r_spec],
        out_specs=o_spec,
        scratch_shapes=scratch,
        compiler_params=params,
    )(a, b, residual)


# ----------------------------------------------------------------------------
# Fused RMSNorm + matmul (used for the fused QKV projection)
# ----------------------------------------------------------------------------

def _norm_matmul_kernel(x_ref, nw_ref, w_ref, o_ref, *, eps):
    x = x_ref[...].astype(jnp.float32)
    var = jnp.mean(x * x, axis=-1, keepdims=True)
    xn = ((x * jax.lax.rsqrt(var + eps)) * nw_ref[...]).astype(jnp.bfloat16)
    o_ref[...] = jnp.dot(
        xn, w_ref[...], preferred_element_type=jnp.float32).astype(o_ref.dtype)


def pallas_norm_matmul(x, norm_w, w, eps=1e-5, out_dtype=jnp.bfloat16):
    """RMSNorm(x) @ w with the norm fused into the matmul kernel.

    The contraction dim D is kept whole (the norm needs the full row); the
    grid tiles over (rows, output columns), both megacore-parallel.
    """
    M, D = x.shape
    D2, N = w.shape
    assert D == D2
    tm = _pick_tile(M, (256, 128, 64, 32, 16, 8))
    tn = _pick_tile(N, (512, 256, 128))
    return pl.pallas_call(
        functools.partial(_norm_matmul_kernel, eps=eps),
        out_shape=jax.ShapeDtypeStruct((M, N), out_dtype),
        grid=(M // tm, N // tn),
        in_specs=[pl.BlockSpec((tm, D), lambda i, j: (i, 0)),
                  pl.BlockSpec((1, D), lambda i, j: (0, 0)),
                  pl.BlockSpec((D, tn), lambda i, j: (0, j))],
        out_specs=pl.BlockSpec((tm, tn), lambda i, j: (i, j)),
        compiler_params=pltpu.CompilerParams(
            dimension_semantics=("parallel", "parallel")),
    )(x, norm_w, w)


# ----------------------------------------------------------------------------
# Row-tiled RMSNorm (ln_pre, final norm)
# ----------------------------------------------------------------------------

def _rmsnorm_kernel(x_ref, w_ref, o_ref, *, eps):
    x = x_ref[...].astype(jnp.float32)
    var = jnp.mean(x * x, axis=-1, keepdims=True)
    o_ref[...] = ((x * jax.lax.rsqrt(var + eps)) * w_ref[...]).astype(o_ref.dtype)


def pallas_rmsnorm(x, w, eps=1e-5, out_dtype=jnp.bfloat16):
    M, D = x.shape
    tm = _pick_tile(M, (256, 128, 64, 32, 16, 8))
    return pl.pallas_call(
        functools.partial(_rmsnorm_kernel, eps=eps),
        out_shape=jax.ShapeDtypeStruct((M, D), out_dtype),
        grid=(M // tm,),
        in_specs=[pl.BlockSpec((tm, D), lambda i: (i, 0)),
                  pl.BlockSpec((1, D), lambda i: (0, 0))],
        out_specs=pl.BlockSpec((tm, D), lambda i: (i, 0)),
        compiler_params=pltpu.CompilerParams(
            dimension_semantics=("parallel",)),
    )(x, w)


# ----------------------------------------------------------------------------
# Flash-style attention with in-kernel block-diagonal (segment-id) mask and
# scalar-prefetched per-block segment bounds used to skip fully-masked tiles.
# ----------------------------------------------------------------------------

def _flash_attn_kernel(qb_ref, kb_ref, sq_ref, sk_ref, q_ref, k_ref, v_ref,
                       o_ref, m_sc, l_sc, acc_sc, *, scale):
    qi = pl.program_id(1)
    kv = pl.program_id(2)

    @pl.when(kv == 0)
    def _():
        m_sc[...] = jnp.full(m_sc.shape, -1e30, jnp.float32)
        l_sc[...] = jnp.zeros_like(l_sc)
        acc_sc[...] = jnp.zeros_like(acc_sc)

    # per-block segment [min, max] bounds live in SMEM (scalar prefetch);
    # segments are contiguous, so tiles from different images never overlap.
    q_lo = qb_ref[qi, 0]
    q_hi = qb_ref[qi, 1]
    k_lo = kb_ref[kv, 0]
    k_hi = kb_ref[kv, 1]
    overlap = jnp.logical_and(q_lo <= k_hi, k_lo <= q_hi)

    @pl.when(overlap)
    def _():
        q = q_ref[0]                                   # (tq,  hd) bf16
        k = k_ref[0]                                   # (tkv, hd) bf16
        v = v_ref[0]                                   # (tkv, hd) bf16
        s = jax.lax.dot_general(
            q, k, (((1,), (1,)), ((), ())),
            preferred_element_type=jnp.float32) * scale          # (tq, tkv)

        # exact block-diagonal mask for boundary tiles
        seg_ok = (jnp.broadcast_to(sq_ref[...], s.shape)
                  == jnp.broadcast_to(sk_ref[...], s.shape))
        s = jnp.where(seg_ok, s, -1e30)

        m_prev = m_sc[...]
        m_new = jnp.maximum(m_prev, jnp.max(s, axis=-1, keepdims=True))
        alpha = jnp.exp(m_prev - m_new)
        p = jnp.exp(s - m_new)
        p = jnp.where(seg_ok, p, 0.0)
        l_sc[...] = alpha * l_sc[...] + jnp.sum(p, axis=-1, keepdims=True)
        acc_sc[...] = alpha * acc_sc[...] + jnp.dot(
            p.astype(v.dtype), v, preferred_element_type=jnp.float32)
        m_sc[...] = m_new

    @pl.when(kv == pl.num_programs(2) - 1)
    def _():
        o_ref[0] = (acc_sc[...]
                    * pl.reciprocal(l_sc[...], approx=True)).astype(o_ref.dtype)


def pallas_flash_attention(seg, qh, kh, vh, scale):
    """qh/kh/vh: (H, S, hd) bf16; seg: (S,) int32 per-token image id."""
    H, S, hd = qh.shape
    tq = _pick_tile(S, (128, 64, 32, 16, 8))
    tkv = _pick_tile(S, (128, 256))      # keep kv tiles lane-aligned (mult of 128)
    nq, nk = S // tq, S // tkv

    seg = seg.astype(jnp.int32)
    seg_col = seg.reshape(S, 1)
    seg_row = seg.reshape(1, S)
    seg_q = seg.reshape(nq, tq)
    seg_k = seg.reshape(nk, tkv)
    qb = jnp.stack([seg_q.min(axis=1), seg_q.max(axis=1)], axis=1)   # (nq, 2)
    kb = jnp.stack([seg_k.min(axis=1), seg_k.max(axis=1)], axis=1)   # (nk, 2)

    grid_spec = pltpu.PrefetchScalarGridSpec(
        num_scalar_prefetch=2,
        grid=(H, nq, nk),
        in_specs=[
            pl.BlockSpec((tq, 1), lambda h, qi, ki, *_: (qi, 0)),
            pl.BlockSpec((1, tkv), lambda h, qi, ki, *_: (0, ki)),
            pl.BlockSpec((1, tq, hd), lambda h, qi, ki, *_: (h, qi, 0)),
            pl.BlockSpec((1, tkv, hd), lambda h, qi, ki, *_: (h, ki, 0)),
            pl.BlockSpec((1, tkv, hd), lambda h, qi, ki, *_: (h, ki, 0)),
        ],
        out_specs=pl.BlockSpec((1, tq, hd), lambda h, qi, ki, *_: (h, qi, 0)),
        scratch_shapes=[pltpu.VMEM((tq, 1), jnp.float32),
                        pltpu.VMEM((tq, 1), jnp.float32),
                        pltpu.VMEM((tq, hd), jnp.float32)],
    )
    return pl.pallas_call(
        functools.partial(_flash_attn_kernel, scale=scale),
        out_shape=jax.ShapeDtypeStruct((H, S, hd), jnp.bfloat16),
        grid_spec=grid_spec,
        compiler_params=pltpu.CompilerParams(
            dimension_semantics=("parallel", "parallel", "arbitrary")),
    )(qb, kb, seg_col, seg_row, qh, kh, vh)


# ----------------------------------------------------------------------------
# Fused SwiGLU FFN (RMSNorm + w1/w3 + gate + w2 + residual)
# Grid (rows, hidden-tiles); hidden axis is a streamed reduction into an f32
# accumulator; the normalized activations are cached in a bf16 VMEM scratch.
# ----------------------------------------------------------------------------

def _ffn_kernel(x_ref, nw_ref, w1_ref, w3_ref, w2_ref, r_ref, o_ref,
                acc_ref, xn_ref, *, eps):
    j = pl.program_id(1)

    @pl.when(j == 0)
    def _():
        acc_ref[...] = jnp.zeros_like(acc_ref)
        x = x_ref[...].astype(jnp.float32)
        var = jnp.mean(x * x, axis=-1, keepdims=True)
        xn_ref[...] = ((x * jax.lax.rsqrt(var + eps))
                       * nw_ref[...]).astype(jnp.bfloat16)

    xn = xn_ref[...]
    h1 = jnp.dot(xn, w1_ref[...], preferred_element_type=jnp.float32)
    h3 = jnp.dot(xn, w3_ref[...], preferred_element_type=jnp.float32)
    gated = ((h1 * jax.nn.sigmoid(h1)) * h3).astype(jnp.bfloat16)   # SiLU, f32 math
    acc_ref[...] += jnp.dot(gated, w2_ref[...],
                            preferred_element_type=jnp.float32)

    @pl.when(j == pl.num_programs(1) - 1)
    def _():
        o_ref[...] = (acc_ref[...]
                      + r_ref[...].astype(jnp.float32)).astype(o_ref.dtype)


def pallas_ffn(x, norm_w, w1, w3, w2, residual, eps=1e-5,
               out_dtype=jnp.bfloat16):
    M, D = x.shape
    Hf = w1.shape[1]
    tm = _pick_tile(M, (256, 128, 64, 32, 16, 8))
    th = _pick_tile(Hf, (512, 256, 128))
    return pl.pallas_call(
        functools.partial(_ffn_kernel, eps=eps),
        out_shape=jax.ShapeDtypeStruct((M, D), out_dtype),
        grid=(M // tm, Hf // th),
        in_specs=[pl.BlockSpec((tm, D), lambda i, j: (i, 0)),
                  pl.BlockSpec((1, D), lambda i, j: (0, 0)),
                  pl.BlockSpec((D, th), lambda i, j: (0, j)),
                  pl.BlockSpec((D, th), lambda i, j: (0, j)),
                  pl.BlockSpec((th, D), lambda i, j: (j, 0)),
                  pl.BlockSpec((tm, D), lambda i, j: (i, 0))],
        out_specs=pl.BlockSpec((tm, D), lambda i, j: (i, 0)),
        scratch_shapes=[pltpu.VMEM((tm, D), jnp.float32),
                        pltpu.VMEM((tm, D), jnp.bfloat16)],
        compiler_params=pltpu.CompilerParams(
            dimension_semantics=("parallel", "arbitrary")),
    )(x, norm_w, w1, w3, w2, residual)


# ----------------------------------------------------------------------------
# Plain-JAX glue: RoPE-2D table, positions, segment ids, patch extraction
# ----------------------------------------------------------------------------

def precompute_freqs_cis_2d(dim, height, width, theta):
    """Returns (cos, sin) of shape (height, width, dim//2)."""
    freqs = 1.0 / (theta ** (jnp.arange(0, dim, 2, dtype=jnp.float32) / dim))
    h = jnp.arange(height, dtype=jnp.float32)
    w = jnp.arange(width, dtype=jnp.float32)
    freqs_h = jnp.outer(h, freqs[::2])      # (H, dim//4)
    freqs_w = jnp.outer(w, freqs[1::2])     # (W, dim//4)
    f2d = jnp.concatenate(
        [jnp.tile(freqs_h[:, None, :], (1, width, 1)),
         jnp.tile(freqs_w[None, :, :], (height, 1, 1))],
        axis=-1)                            # (H, W, dim//2)
    return jnp.cos(f2d), jnp.sin(f2d)


def position_meshgrid(shapes_hw):
    pos = []
    for (Hp, Wp) in shapes_hw:
        r, c = jnp.meshgrid(jnp.arange(Hp), jnp.arange(Wp), indexing="ij")
        pos.append(jnp.stack([r.reshape(-1), c.reshape(-1)], axis=-1))
    return jnp.concatenate(pos, axis=0)     # (S, 2)


def segment_ids(seqlens, total_len):
    ids = jnp.concatenate(
        [jnp.full((n,), i, dtype=jnp.int32) for i, n in enumerate(seqlens)])
    pad = total_len - ids.shape[0]
    if pad:
        ids = jnp.concatenate(
            [ids, jnp.full((pad,), len(seqlens), dtype=jnp.int32)])
    return ids                              # (total_len,)


def extract_patches(img, patch_size):
    """img: (C, H, W) -> (Hp*Wp, C*P*P), row-major over the patch grid."""
    C, H, W = img.shape
    P = patch_size
    Hp, Wp = H // P, W // P
    patches = img.reshape(C, Hp, P, Wp, P)
    patches = patches.transpose(1, 3, 0, 2, 4).reshape(Hp * Wp, C * P * P)
    return patches, (Hp, Wp)


def apply_rope(x, cos, sin):
    """x: (S, H, hd); cos/sin: (S, hd//2). Complex-pair rotation (f32)."""
    S, H, hd = x.shape
    xp = x.astype(jnp.float32).reshape(S, H, hd // 2, 2)
    xr, xi = xp[..., 0], xp[..., 1]
    c = cos[:, None, :]
    s = sin[:, None, :]
    out_r = xr * c - xi * s
    out_i = xr * s + xi * c
    return jnp.stack([out_r, out_i], axis=-1).reshape(S, H, hd)


# ----------------------------------------------------------------------------
# PixtralViT forward
# ----------------------------------------------------------------------------

def init_params(key, cfg):
    C, D, P = cfg["in_channels"], cfg["dim"], cfg["patch_size"]
    Hf = cfg["hidden_dim"]
    n_layers = cfg["n_layers"]
    scale = 0.02
    keys = jax.random.split(key, 1 + 5 * n_layers)
    ki = iter(keys)

    def w(k, shape):
        return (scale * jax.random.normal(k, shape, jnp.float32)).astype(jnp.bfloat16)

    params = {
        "conv_w": w(next(ki), (C * P * P, D)),
        "ln_pre_w": jnp.ones((1, D), jnp.float32),
        "final_norm_w": jnp.ones((1, D), jnp.float32),
        "layers": [],
    }
    for _ in range(n_layers):
        params["layers"].append({
            "attn_norm_w": jnp.ones((1, D), jnp.float32),
            "wqkv": w(next(ki), (D, 3 * D)),        # wq | wk | wv fused
            "wo": w(next(ki), (D, D)),
            "ffn_norm_w": jnp.ones((1, D), jnp.float32),
            "w1": w(next(ki), (D, Hf)),
            "w3": w(next(ki), (D, Hf)),
            "w2": w(next(ki), (Hf, D)),
        })
    return params


def attention_block(x, lp, cos, sin, seg, n_heads):
    S, D = x.shape
    hd = D // n_heads
    # fused RMSNorm + QKV projection (single (D, 3D) matmul)
    qkv = pallas_norm_matmul(x, lp["attn_norm_w"], lp["wqkv"])   # (S, 3D) bf16
    q, k, v = jnp.split(qkv, 3, axis=-1)
    q = apply_rope(q.reshape(S, n_heads, hd), cos, sin)
    k = apply_rope(k.reshape(S, n_heads, hd), cos, sin)
    v = v.reshape(S, n_heads, hd)
    qh = q.transpose(1, 0, 2).astype(jnp.bfloat16)
    kh = k.transpose(1, 0, 2).astype(jnp.bfloat16)
    vh = v.transpose(1, 0, 2).astype(jnp.bfloat16)
    o = pallas_flash_attention(seg, qh, kh, vh, scale=1.0 / math.sqrt(hd))
    o = o.transpose(1, 0, 2).reshape(S, D)
    # output projection with the residual add fused into the epilogue
    return pallas_matmul(o, lp["wo"], residual=x)


def pixtral_vit_forward(params, images, cfg):
    P = cfg["patch_size"]
    n_heads = cfg["n_heads"]
    head_dim = cfg["dim"] // n_heads

    # ---- patch conv as im2col + tiled Pallas matmul -----------------------
    patch_rows, shapes_hw = [], []
    for img in images:
        patches, hw = extract_patches(img.astype(jnp.float32), P)
        patch_rows.append(patches)
        shapes_hw.append(hw)
    x_patches = jnp.concatenate(patch_rows, axis=0)           # (S, C*P*P)
    n_tokens = x_patches.shape[0]

    # pad the token dim so every kernel grid divides evenly; padded tokens get
    # a distinct segment id and are sliced off at the end.
    s_pad = ((n_tokens + SEQ_ALIGN - 1) // SEQ_ALIGN) * SEQ_ALIGN
    x_patches = jnp.pad(x_patches, ((0, s_pad - n_tokens), (0, 0)))
    x = pallas_matmul(x_patches.astype(jnp.bfloat16), params["conv_w"])  # (S_pad, D)

    # ---- ln_pre (row-tiled RMSNorm) ---------------------------------------
    x = pallas_rmsnorm(x, params["ln_pre_w"])

    # ---- 2-D RoPE freqs gathered at patch positions -----------------------
    grid_side = cfg["img_size"] // P
    cos2d, sin2d = precompute_freqs_cis_2d(head_dim, grid_side, grid_side,
                                           cfg["rope_theta"])
    positions = position_meshgrid(shapes_hw)                  # (n_tokens, 2)
    positions = jnp.pad(positions, ((0, s_pad - n_tokens), (0, 0)))
    cos = cos2d[positions[:, 0], positions[:, 1]]             # (S_pad, hd//2)
    sin = sin2d[positions[:, 0], positions[:, 1]]

    # ---- per-token image ids (block-diagonal mask built in-kernel) --------
    seg = segment_ids([h * w for h, w in shapes_hw], s_pad)

    # ---- transformer layers ------------------------------------------------
    for lp in params["layers"]:
        x = attention_block(x, lp, cos, sin, seg, n_heads)
        x = pallas_ffn(x, lp["ffn_norm_w"], lp["w1"], lp["w3"], lp["w2"],
                       residual=x)

    # TODO(synk): the reference Transformer class is external; a final RMSNorm
    # is assumed here (standard Mistral-style block stack).
    x = pallas_rmsnorm(x, params["final_norm_w"], out_dtype=jnp.float32)
    return x[:n_tokens]                                        # (N_toks, D)


# ----------------------------------------------------------------------------
# main
# ----------------------------------------------------------------------------

if __name__ == "__main__":
    cfg = dict(
        in_channels=3,
        dim=256,
        patch_size=4,
        img_size=64,
        n_heads=2,          # head_dim = 128 -> lane-dense attention tiles
        n_layers=2,
        hidden_dim=512,
        rope_theta=10000.0,
    )

    key = jax.random.PRNGKey(0)
    k_img1, k_img2, k_params = jax.random.split(key, 3)

    # Two variable-size images (C, H, W): 128 + 64 = 192 patch tokens.
    images = [
        jax.random.normal(k_img1, (3, 64, 32), jnp.float32),
        jax.random.normal(k_img2, (3, 32, 32), jnp.float32),
    ]

    params = init_params(k_params, cfg)

    out = pixtral_vit_forward(params, images, cfg)
    out = jax.block_until_ready(out)

    expected_tokens = (64 // 4) * (32 // 4) + (32 // 4) * (32 // 4)   # 192
    assert out.shape == (expected_tokens, cfg["dim"]), out.shape
    assert bool(jnp.all(jnp.isfinite(out)))
    print("KERNEL_OK")
</pallas_src>

<mosaic_0001>
module attributes {stable_mosaic.version = 11 : i64} {
  func.func @_matmul_kernel(%arg0: i32, %arg1: i32, %arg2: i32, %arg3: memref<256x48xbf16, #tpu.memory_space<vmem>>, %arg4: memref<48x256xbf16, #tpu.memory_space<vmem>>, %arg5: memref<256x256xbf16, #tpu.memory_space<vmem>>, %arg6: memref<256x256xf32, #tpu.memory_space<vmem>>) attributes {dimension_semantics = [#tpu.dimension_semantics<parallel>, #tpu.dimension_semantics<parallel>, #tpu.dimension_semantics<arbitrary>], iteration_bounds = array<i64: 1, 1, 1>, scalar_prefetch = 0 : i64, scratch_operands = 1 : i64, tpu.core_type = #tpu.core_type<tc>, window_params = [{transform_indices = @transform_0, window_bounds = array<i64: 256, 48>}, {transform_indices = @transform_1, window_bounds = array<i64: 48, 256>}, {transform_indices = @transform_2, window_bounds = array<i64: 256, 256>}]} {
    %c0_i32 = arith.constant 0 : i32
    %0 = arith.cmpi eq, %arg2, %c0_i32 : i32
    %1 = arith.extui %0 : i1 to i32
    %c0_i32_0 = arith.constant 0 : i32
    %2 = arith.cmpi ne, %1, %c0_i32_0 : i32
    scf.if %2 {
      %cst_10 = arith.constant 0.000000e+00 : f32
      %12 = vector.broadcast %cst_10 : f32 to vector<256x256xf32>
      %c0_11 = arith.constant 0 : index
      %c0_12 = arith.constant 0 : index
      %13 = vector.load %arg6[%c0_11, %c0_12] : memref<256x256xf32, #tpu.memory_space<vmem>>, vector<256x256xf32>
      tpu.vector_store %arg6[%c0_11, %c0_12], %12 {strides = array<i32>} : memref<256x256xf32, #tpu.memory_space<vmem>>, vector<256x256xf32>,
    } else {
    }
    %c0 = arith.constant 0 : index
    %c0_1 = arith.constant 0 : index
    %3 = vector.load %arg6[%c0, %c0_1] : memref<256x256xf32, #tpu.memory_space<vmem>>, vector<256x256xf32>
    %c0_2 = arith.constant 0 : index
    %c0_3 = arith.constant 0 : index
    %4 = vector.load %arg3[%c0_2, %c0_3] : memref<256x48xbf16, #tpu.memory_space<vmem>>, vector<256x48xbf16>
    %c0_4 = arith.constant 0 : index
    %c0_5 = arith.constant 0 : index
    %5 = vector.load %arg4[%c0_4, %c0_5] : memref<48x256xbf16, #tpu.memory_space<vmem>>, vector<48x256xbf16>
    %cst = arith.constant dense<0.000000e+00> : vector<256x256xf32>
    %6 = tpu.matmul %4, %5, %cst {dimension_numbers = #tpu.dot_dimension_numbers<[1], [0], [0], [1], [0, 0, 1, 1], [], []>} : vector<256x48xbf16>, vector<48x256xbf16>, vector<256x256xf32> -> vector<256x256xf32>
    %7 = arith.addf %3, %6 : vector<256x256xf32>
    %c0_6 = arith.constant 0 : index
    %c0_7 = arith.constant 0 : index
    %8 = vector.load %arg6[%c0_6, %c0_7] : memref<256x256xf32, #tpu.memory_space<vmem>>, vector<256x256xf32>
    tpu.vector_store %arg6[%c0_6, %c0_7], %7 {strides = array<i32>} : memref<256x256xf32, #tpu.memory_space<vmem>>, vector<256x256xf32>,
    %c0_i32_8 = arith.constant 0 : i32
    %9 = arith.cmpi eq, %arg2, %c0_i32_8 : i32
    %10 = arith.extui %9 : i1 to i32
    %c0_i32_9 = arith.constant 0 : i32
    %11 = arith.cmpi ne, %10, %c0_i32_9 : i32
    scf.if %11 {
      %c0_10 = arith.constant 0 : index
      %c0_11 = arith.constant 0 : index
      %12 = vector.load %arg6[%c0_10, %c0_11] : memref<256x256xf32, #tpu.memory_space<vmem>>, vector<256x256xf32>
      %13 = arith.truncf %12 : vector<256x256xf32> to vector<256x256xbf16>
      %c0_12 = arith.constant 0 : index
      %c0_13 = arith.constant 0 : index
      %14 = vector.load %arg5[%c0_12, %c0_13] : memref<256x256xbf16, #tpu.memory_space<vmem>>, vector<256x256xbf16>
      tpu.vector_store %arg5[%c0_12, %c0_13], %13 {strides = array<i32>} : memref<256x256xbf16, #tpu.memory_space<vmem>>, vector<256x256xbf16>,
    } else {
    }
    return
  }
  func.func @transform_0(%arg0: i32, %arg1: i32, %arg2: i32) -> (i32, i32) {
    %c0_i32 = arith.constant 0 : i32
    return %arg0, %arg2 : i32, i32
  }
  func.func @transform_1(%arg0: i32, %arg1: i32, %arg2: i32) -> (i32, i32) {
    %c0_i32 = arith.constant 0 : i32
    return %arg2, %arg1 : i32, i32
  }
  func.func @transform_2(%arg0: i32, %arg1: i32, %arg2: i32) -> (i32, i32) {
    %c0_i32 = arith.constant 0 : i32
    return %arg0, %arg1 : i32, i32
  }
}

</mosaic_0001>

<llo_original>
// kernel: tpu_custom_call.1
$region0: #{tpu_custom_call.1}
  #allocation0 [shape = 'u32[]', space=smem, size = 0x4, offset = 0x4, fixed_abs, tag = 'smem constant byte address 0x4 - core index']
  #allocation1 [shape = 'u32[144,128]{1,0:T(1,128)}', space=vmem, size = 0x12000, scoped, tag = 'internal scratch']
  #allocation2 [shape = 'f32[256,256]{1,0:T(8,128)}', space=vmem, size = 0x40000, scoped, tag = 'scratch operand']
  %s0 = inlined_call_operand.vmem [shape: bf16[256,48], index: 0, kind: input, shape index: {}]
  %s1 = inlined_call_operand.vmem [shape: bf16[48,256], index: 1, kind: input, shape index: {}]
  %s2 = inlined_call_operand.hbm [shape: bf16[256,256], index: 2, kind: output, shape index: {}]
  %s3 = sld [smem:[#allocation0]]
  $region26: #{tpu_custom_call.1} parent=0
    _
  %s5 = ssub.s32 1, %s3
  %s6 = scalar_select 0, %s5, %s3
  $region1: #{tpu_custom_call.1} parent=0
    #allocation3 [shape = 'u8[131072]{0}', space=vmem, size = 0x20000, scoped, tag = 'output window, operand 0, single buffered']
    #allocation4 [shape = 's32[1]{0}', space=sflag, size = 0x4, scoped, tag = 'scoped memory for tpu_custom_call.1']
    %7 = vsyncpa [#allocation4], 0
    // Predicated region
    $region2: #{tpu_custom_call.1} parent=1 // pred_check
      _
    $region3: #{tpu_custom_call.1} parent=1 // pred_check_branch
      %9 = sbr.rel (0) target = $region5
    $region4: #{tpu_custom_call.1} parent=1 // pred_region
      _
    $region5: #{tpu_custom_call.1} parent=1 // pred_fallthru
      _
    // Predicated region
    $region6: #{tpu_custom_call.1} parent=1 // pred_check
      _
    $region7: #{tpu_custom_call.1} parent=1 // pred_check_branch
      %11 = sbr.rel (0) target = $region9
    $region8: #{tpu_custom_call.1} parent=1 // pred_region
      _
    $region9: #{tpu_custom_call.1} parent=1 // pred_fallthru
      _
    %p13 = scmp.eq.s32.totalorder 0, 0
    // Predicated region
    $region10: #{tpu_custom_call.1} parent=1 // pred_check
      %p14 = pneg %p13
    $region11: #{tpu_custom_call.1} parent=1 // pred_check_branch
      %16 = sbr.rel (%p14) target = $region13
    $region12: #{tpu_custom_call.1} parent=1 // pred_region
      %17 = vst [vmem:[#allocation2] sm:$0xff] 0.0
      %18 = vst [vmem:[#allocation2 + $0x8] sm:$0xff] 0.0
      %19 = vst [vmem:[#allocation2 + $0x10] sm:$0xff] 0.0
      %20 = vst [vmem:[#allocation2 + $0x18] sm:$0xff] 0.0
      %21 = vst [vmem:[#allocation2 + $0x20] sm:$0xff] 0.0
      %22 = vst [vmem:[#allocation2 + $0x28] sm:$0xff] 0.0
      %23 = vst [vmem:[#allocation2 + $0x30] sm:$0xff] 0.0
      %24 = vst [vmem:[#allocation2 + $0x38] sm:$0xff] 0.0
      %25 = vst [vmem:[#allocation2 + $0x40] sm:$0xff] 0.0
      %26 = vst [vmem:[#allocation2 + $0x48] sm:$0xff] 0.0
      %27 = vst [vmem:[#allocation2 + $0x50] sm:$0xff] 0.0
      %28 = vst [vmem:[#allocation2 + $0x58] sm:$0xff] 0.0
      %29 = vst [vmem:[#allocation2 + $0x60] sm:$0xff] 0.0
      %30 = vst [vmem:[#allocation2 + $0x68] sm:$0xff] 0.0
      %31 = vst [vmem:[#allocation2 + $0x70] sm:$0xff] 0.0
      %32 = vst [vmem:[#allocation2 + $0x78] sm:$0xff] 0.0
      %33 = vst [vmem:[#allocation2 + $0x80] sm:$0xff] 0.0
      %34 = vst [vmem:[#allocation2 + $0x88] sm:$0xff] 0.0
      %35 = vst [vmem:[#allocation2 + $0x90] sm:$0xff] 0.0
      %36 = vst [vmem:[#allocation2 + $0x98] sm:$0xff] 0.0
      %37 = vst [vmem:[#allocation2 + $0xa0] sm:$0xff] 0.0
      %38 = vst [vmem:[#allocation2 + $0xa8] sm:$0xff] 0.0
      %39 = vst [vmem:[#allocation2 + $0xb0] sm:$0xff] 0.0
      %40 = vst [vmem:[#allocation2 + $0xb8] sm:$0xff] 0.0
      %41 = vst [vmem:[#allocation2 + $0xc0] sm:$0xff] 0.0
      %42 = vst [vmem:[#allocation2 + $0xc8] sm:$0xff] 0.0
      %43 = vst [vmem:[#allocation2 + $0xd0] sm:$0xff] 0.0
      %44 = vst [vmem:[#allocation2 + $0xd8] sm:$0xff] 0.0
      %45 = vst [vmem:[#allocation2 + $0xe0] sm:$0xff] 0.0
      %46 = vst [vmem:[#allocation2 + $0xe8] sm:$0xff] 0.0
      %47 = vst [vmem:[#allocation2 + $0xf0] sm:$0xff] 0.0
      %48 = vst [vmem:[#allocation2 + $0xf8] sm:$0xff] 0.0
      %49 = vst [vmem:[#allocation2 + $0x100] sm:$0xff] 0.0
      %50 = vst [vmem:[#allocation2 + $0x108] sm:$0xff] 0.0
      %51 = vst [vmem:[#allocation2 + $0x110] sm:$0xff] 0.0
      %52 = vst [vmem:[#allocation2 + $0x118] sm:$0xff] 0.0
      %53 = vst [vmem:[#allocation2 + $0x120] sm:$0xff] 0.0
      %54 = vst [vmem:[#allocation2 + $0x128] sm:$0xff] 0.0
      %55 = vst [vmem:[#allocation2 + $0x130] sm:$0xff] 0.0
      %56 = vst [vmem:[#allocation2 + $0x138] sm:$0xff] 0.0
      %57 = vst [vmem:[#allocation2 + $0x140] sm:$0xff] 0.0
      %58 = vst [vmem:[#allocation2 + $0x148] sm:$0xff] 0.0
      %59 = vst [vmem:[#allocation2 + $0x150] sm:$0xff] 0.0
      %60 = vst [vmem:[#allocation2 + $0x158] sm:$0xff] 0.0
      %61 = vst [vmem:[#allocation2 + $0x160] sm:$0xff] 0.0
      %62 = vst [vmem:[#allocation2 + $0x168] sm:$0xff] 0.0
      %63 = vst [vmem:[#allocation2 + $0x170] sm:$0xff] 0.0
      %64 = vst [vmem:[#allocation2 + $0x178] sm:$0xff] 0.0
      %65 = vst [vmem:[#allocation2 + $0x180] sm:$0xff] 0.0
      %66 = vst [vmem:[#allocation2 + $0x188] sm:$0xff] 0.0
      %67 = vst [vmem:[#allocation2 + $0x190] sm:$0xff] 0.0
      %68 = vst [vmem:[#allocation2 + $0x198] sm:$0xff] 0.0
      %69 = vst [vmem:[#allocation2 + $0x1a0] sm:$0xff] 0.0
      %70 = vst [vmem:[#allocation2 + $0x1a8] sm:$0xff] 0.0
      %71 = vst [vmem:[#allocation2 + $0x1b0] sm:$0xff] 0.0
      %72 = vst [vmem:[#allocation2 + $0x1b8] sm:$0xff] 0.0
      %73 = vst [vmem:[#allocation2 + $0x1c0] sm:$0xff] 0.0
      %74 = vst [vmem:[#allocation2 + $0x1c8] sm:$0xff] 0.0
      %75 = vst [vmem:[#allocation2 + $0x1d0] sm:$0xff] 0.0
      %76 = vst [vmem:[#allocation2 + $0x1d8] sm:$0xff] 0.0
      %77 = vst [vmem:[#allocation2 + $0x1e0] sm:$0xff] 0.0
      %78 = vst [vmem:[#allocation2 + $0x1e8] sm:$0xff] 0.0
      %79 = vst [vmem:[#allocation2 + $0x1f0] sm:$0xff] 0.0
      %80 = vst [vmem:[#allocation2 + $0x1f8] sm:$0xff] 0.0
    $region13: #{tpu_custom_call.1} parent=1 // pred_fallthru
      _
    %v81 = vld [vmem:[#allocation2] sm:$0xff]
    %v82 = vld [vmem:[#allocation2 + $0x8] sm:$0xff]
    %v83 = vld [vmem:[#allocation2 + $0x10] sm:$0xff]
    %v84 = vld [vmem:[#allocation2 + $0x18] sm:$0xff]
    %v85 = vld [vmem:[#allocation2 + $0x20] sm:$0xff]
    %v86 = vld [vmem:[#allocation2 + $0x28] sm:$0xff]
    %v87 = vld [vmem:[#allocation2 + $0x30] sm:$0xff]
    %v88 = vld [vmem:[#allocation2 + $0x38] sm:$0xff]
    %v89 = vld [vmem:[#allocation2 + $0x40] sm:$0xff]
    %v90 = vld [vmem:[#allocation2 + $0x48] sm:$0xff]
    %v91 = vld [vmem:[#allocation2 + $0x50] sm:$0xff]
    %v92 = vld [vmem:[#allocation2 + $0x58] sm:$0xff]
    %v93 = vld [vmem:[#allocation2 + $0x60] sm:$0xff]
    %v94 = vld [vmem:[#allocation2 + $0x68] sm:$0xff]
    %v95 = vld [vmem:[#allocation2 + $0x70] sm:$0xff]
    %v96 = vld [vmem:[#allocation2 + $0x78] sm:$0xff]
    %v97 = vld [vmem:[#allocation2 + $0x80] sm:$0xff]
    %v98 = vld [vmem:[#allocation2 + $0x88] sm:$0xff]
    %v99 = vld [vmem:[#allocation2 + $0x90] sm:$0xff]
    %v100 = vld [vmem:[#allocation2 + $0x98] sm:$0xff]
    %v101 = vld [vmem:[#allocation2 + $0xa0] sm:$0xff]
    %v102 = vld [vmem:[#allocation2 + $0xa8] sm:$0xff]
    %v103 = vld [vmem:[#allocation2 + $0xb0] sm:$0xff]
    %v104 = vld [vmem:[#allocation2 + $0xb8] sm:$0xff]
    %v105 = vld [vmem:[#allocation2 + $0xc0] sm:$0xff]
    %v106 = vld [vmem:[#allocation2 + $0xc8] sm:$0xff]
    %v107 = vld [vmem:[#allocation2 + $0xd0] sm:$0xff]
    %v108 = vld [vmem:[#allocation2 + $0xd8] sm:$0xff]
    %v109 = vld [vmem:[#allocation2 + $0xe0] sm:$0xff]
    %v110 = vld [vmem:[#allocation2 + $0xe8] sm:$0xff]
    %v111 = vld [vmem:[#allocation2 + $0xf0] sm:$0xff]
    %v112 = vld [vmem:[#allocation2 + $0xf8] sm:$0xff]
    %v113 = vld [vmem:[#allocation2 + $0x100] sm:$0xff]
    %v114 = vld [vmem:[#allocation2 + $0x108] sm:$0xff]
    %v115 = vld [vmem:[#allocation2 + $0x110] sm:$0xff]
    %v116 = vld [vmem:[#allocation2 + $0x118] sm:$0xff]
    %v117 = vld [vmem:[#allocation2 + $0x120] sm:$0xff]
    %v118 = vld [vmem:[#allocation2 + $0x128] sm:$0xff]
    %v119 = vld [vmem:[#allocation2 + $0x130] sm:$0xff]
    %v120 = vld [vmem:[#allocation2 + $0x138] sm:$0xff]
    %v121 = vld [vmem:[#allocation2 + $0x140] sm:$0xff]
    %v122 = vld [vmem:[#allocation2 + $0x148] sm:$0xff]
    %v123 = vld [vmem:[#allocation2 + $0x150] sm:$0xff]
    %v124 = vld [vmem:[#allocation2 + $0x158] sm:$0xff]
    %v125 = vld [vmem:[#allocation2 + $0x160] sm:$0xff]
    %v126 = vld [vmem:[#allocation2 + $0x168] sm:$0xff]
    %v127 = vld [vmem:[#allocation2 + $0x170] sm:$0xff]
    %v128 = vld [vmem:[#allocation2 + $0x178] sm:$0xff]
    %v129 = vld [vmem:[#allocation2 + $0x180] sm:$0xff]
    %v130 = vld [vmem:[#allocation2 + $0x188] sm:$0xff]
    %v131 = vld [vmem:[#allocation2 + $0x190] sm:$0xff]
    %v132 = vld [vmem:[#allocation2 + $0x198] sm:$0xff]
    %v133 = vld [vmem:[#allocation2 + $0x1a0] sm:$0xff]
    %v134 = vld [vmem:[#allocation2 + $0x1a8] sm:$0xff]
    %v135 = vld [vmem:[#allocation2 + $0x1b0] sm:$0xff]
    %v136 = vld [vmem:[#allocation2 + $0x1b8] sm:$0xff]
    %v137 = vld [vmem:[#allocation2 + $0x1c0] sm:$0xff]
    %v138 = vld [vmem:[#allocation2 + $0x1c8] sm:$0xff]
    %v139 = vld [vmem:[#allocation2 + $0x1d0] sm:$0xff]
    %v140 = vld [vmem:[#allocation2 + $0x1d8] sm:$0xff]
    %v141 = vld [vmem:[#allocation2 + $0x1e0] sm:$0xff]
    %v142 = vld [vmem:[#allocation2 + $0x1e8] sm:$0xff]
    %v143 = vld [vmem:[#allocation2 + $0x1f0] sm:$0xff]
    %v144 = vld [vmem:[#allocation2 + $0x1f8] sm:$0xff]
    %v145 = vld [vmem:[%s0] sm:$0xf]
    %v146 = vld [vmem:[%s0 + $0x4] sm:$0xf]
    %v147 = vld [vmem:[%s0 + $0x8] sm:$0xf]
    %v148 = vld [vmem:[%s0 + $0xc] sm:$0xf]
    %v149 = vld [vmem:[%s0 + $0x10] sm:$0xf]
    %v150 = vld [vmem:[%s0 + $0x14] sm:$0xf]
    %v151 = vld [vmem:[%s0 + $0x18] sm:$0xf]
    %v152 = vld [vmem:[%s0 + $0x1c] sm:$0xf]
    %v153 = vld [vmem:[%s0 + $0x20] sm:$0xf]
    %v154 = vld [vmem:[%s0 + $0x24] sm:$0xf]
    %v155 = vld [vmem:[%s0 + $0x28] sm:$0xf]
    %v156 = vld [vmem:[%s0 + $0x2c] sm:$0xf]
    %v157 = vld [vmem:[%s0 + $0x30] sm:$0xf]
    %v158 = vld [vmem:[%s0 + $0x34] sm:$0xf]
    %v159 = vld [vmem:[%s0 + $0x38] sm:$0xf]
    %v160 = vld [vmem:[%s0 + $0x3c] sm:$0xf]
    %v161 = vld [vmem:[%s0 + $0x40] sm:$0xf]
    %v162 = vld [vmem:[%s0 + $0x44] sm:$0xf]
    %v163 = vld [vmem:[%s0 + $0x48] sm:$0xf]
    %v164 = vld [vmem:[%s0 + $0x4c] sm:$0xf]
    %v165 = vld [vmem:[%s0 + $0x50] sm:$0xf]
    %v166 = vld [vmem:[%s0 + $0x54] sm:$0xf]
    %v167 = vld [vmem:[%s0 + $0x58] sm:$0xf]
    %v168 = vld [vmem:[%s0 + $0x5c] sm:$0xf]
    %v169 = vld [vmem:[%s0 + $0x60] sm:$0xf]
    %v170 = vld [vmem:[%s0 + $0x64] sm:$0xf]
    %v171 = vld [vmem:[%s0 + $0x68] sm:$0xf]
    %v172 = vld [vmem:[%s0 + $0x6c] sm:$0xf]
    %v173 = vld [vmem:[%s0 + $0x70] sm:$0xf]
    %v174 = vld [vmem:[%s0 + $0x74] sm:$0xf]
    %v175 = vld [vmem:[%s0 + $0x78] sm:$0xf]
    %v176 = vld [vmem:[%s0 + $0x7c] sm:$0xf]
    %v177 = vld [vmem:[%s1] sm:$0xff]
    %v178 = vld [vmem:[%s1 + $0x8] sm:$0xff]
    %v179 = vld [vmem:[%s1 + $0x10] sm:$0xff]
    %v180 = vld [vmem:[%s1 + $0x18] sm:$0xff]
    %v181 = vld [vmem:[%s1 + $0x20] sm:$0xff]
    %v182 = vld [vmem:[%s1 + $0x28] sm:$0xff]
    %v215 = vunpack.c.l.b16 %v145
    %v216 = vunpack.c.l.b16 %v146
    %v217 = vunpack.c.l.b16 %v147
    %v218 = vunpack.c.l.b16 %v148
    %v219 = vunpack.c.l.b16 %v149
    %v220 = vunpack.c.l.b16 %v150
    %v221 = vunpack.c.l.b16 %v151
    %v222 = vunpack.c.l.b16 %v152
    %v223 = vunpack.c.l.b16 %v153
    %v224 = vunpack.c.l.b16 %v154
    %v225 = vunpack.c.l.b16 %v155
    %v226 = vunpack.c.l.b16 %v156
    %v227 = vunpack.c.l.b16 %v157
    %v228 = vunpack.c.l.b16 %v158
    %v229 = vunpack.c.l.b16 %v159
    %v230 = vunpack.c.l.b16 %v160
    %v231 = vunpack.c.l.b16 %v161
    %v232 = vunpack.c.l.b16 %v162
    %v233 = vunpack.c.l.b16 %v163
    %v234 = vunpack.c.l.b16 %v164
    %v235 = vunpack.c.l.b16 %v165
    %v236 = vunpack.c.l.b16 %v166
    %v237 = vunpack.c.l.b16 %v167
    %v238 = vunpack.c.l.b16 %v168
    %v239 = vunpack.c.l.b16 %v169
    %v240 = vunpack.c.l.b16 %v170
    %v241 = vunpack.c.l.b16 %v171
    %v242 = vunpack.c.l.b16 %v172
    %v243 = vunpack.c.l.b16 %v173
    %v244 = vunpack.c.l.b16 %v174
    %v245 = vunpack.c.l.b16 %v175
    %v246 = vunpack.c.l.b16 %v176
    %v247 = vpack.c.b16 %v216, %v215
    %v248 = vpack.c.b16 %v218, %v217
    %v249 = vpack.c.b16 %v220, %v219
    %v250 = vpack.c.b16 %v222, %v221
    %v251 = vpack.c.b16 %v224, %v223
    %v252 = vpack.c.b16 %v226, %v225
    %v253 = vpack.c.b16 %v228, %v227
    %v254 = vpack.c.b16 %v230, %v229
    %v255 = vpack.c.b16 %v232, %v231
    %v256 = vpack.c.b16 %v234, %v233
    %v257 = vpack.c.b16 %v236, %v235
    %v258 = vpack.c.b16 %v238, %v237
    %v259 = vpack.c.b16 %v240, %v239
    %v260 = vpack.c.b16 %v242, %v241
    %v261 = vpack.c.b16 %v244, %v243
    %v262 = vpack.c.b16 %v246, %v245
    %v269 = vunpack.c.l.b16 %v177
    %v270 = vunpack.c.h.b16 %v177
    %v271 = vunpack.c.l.b16 %v178
    %v272 = vunpack.c.h.b16 %v178
    %v273 = vunpack.c.l.b16 %v179
    %v274 = vunpack.c.h.b16 %v179
    %v275 = vunpack.c.l.b16 %v180
    %v276 = vunpack.c.h.b16 %v180
    %v277 = vunpack.c.l.b16 %v181
    %v278 = vunpack.c.h.b16 %v181
    %v279 = vunpack.c.l.b16 %v182
    %v280 = vunpack.c.h.b16 %v182
    %v281 = vpack.c.b16 %v271, %v269
    %v282 = vpack.c.b16 %v272, %v270
    %v283 = vpack.c.b16 %v275, %v273
    %v284 = vpack.c.b16 %v276, %v274
    %v285 = vpack.c.b16 %v279, %v277
    %v286 = vpack.c.b16 %v280, %v278
    %vm293 = vcmask 392192
    %v295 = vsel %vm293, %v247, 0
    %v298 = vsel %vm293, %v248, 0
    %v301 = vsel %vm293, %v249, 0
    %v304 = vsel %vm293, %v250, 0
    %v307 = vsel %vm293, %v251, 0
    %v310 = vsel %vm293, %v252, 0
    %v313 = vsel %vm293, %v253, 0
    %v316 = vsel %vm293, %v254, 0
    %v319 = vsel %vm293, %v255, 0
    %v322 = vsel %vm293, %v256, 0
    %v325 = vsel %vm293, %v257, 0
    %v328 = vsel %vm293, %v258, 0
    %v331 = vsel %vm293, %v259, 0
    %v334 = vsel %vm293, %v260, 0
    %v337 = vsel %vm293, %v261, 0
    %v340 = vsel %vm293, %v262, 0
    %342 = vmatprep.subr.bf16.mxu0 %v282
    %343 = vmatpush1.bf16.msra.mxu0 %v281
    %344 = vmatprep.subr.bf16.mxu0 %v284
    %345 = vmatpush1.bf16.msra.mxu0 %v283
    %346 = vmatprep.subr.bf16.mxu0 %v286
    %347 = vmatpush1.bf16.msra.mxu0 %v285
    %348 = vmatprep.subr.bf16.mxu0 0
    %349 = vmatpush1.bf16.msra.mxu0 0
    %350 = vmatprep.subr.bf16.mxu0 0
    %351 = vmatpush1.bf16.msra.mxu0 0
    %352 = vmatprep.subr.bf16.mxu0 0
    %353 = vmatpush1.bf16.msra.mxu0 0
    %354 = vmatprep.subr.bf16.mxu0 0
    %355 = vmatpush1.bf16.msra.mxu0 0
    %356 = vmatprep.subr.bf16.mxu0 0
    %357 = vmatpush1.bf16.msra.mxu0 0
    %358 = vmatprep.subr.bf16.mxu0 0
    %359 = vmatpush1.bf16.msra.mxu0 0
    %360 = vmatprep.subr.bf16.mxu0 0
    %361 = vmatpush1.bf16.msra.mxu0 0
    %362 = vmatprep.subr.bf16.mxu0 0
    %363 = vmatpush1.bf16.msra.mxu0 0
    %364 = vmatprep.subr.bf16.mxu0 0
    %365 = vmatpush1.bf16.msra.mxu0 0
    %366 = vmatprep.subr.bf16.mxu0 0
    %367 = vmatpush1.bf16.msra.mxu0 0
    %368 = vmatprep.subr.bf16.mxu0 0
    %369 = vmatpush1.bf16.msra.mxu0 0
    %370 = vmatprep.subr.bf16.mxu0 0
    %371 = vmatpush1.bf16.msra.mxu0 0
    %372 = vmatprep.subr.bf16.mxu0 0
    %373 = vmatpush1.bf16.msra.mxu0 0
    %374 = vmatprep.mubr.bf16.mxu0 0
    %375 = vmatmul.mubr.bf16.gmra.mrb[0].mxu0 %v295
    %v376 = vpop.f32.mrb[0].mxu0
    %v377 = vadd.f32 0.0, %v376
    %v378 = vpop.f32.mrb[0].mxu0
    %v379 = vadd.f32 0.0, %v378
    %v380 = vpop.f32.mrb[0].mxu0
    %v381 = vadd.f32 0.0, %v380
    %v382 = vpop.f32.mrb[0].mxu0
    %v383 = vadd.f32 0.0, %v382
    %384 = vmatprep.mubr.bf16.mxu0 0
    %385 = vmatmul.mubr.bf16.gmra.mrb[0].mxu0 %v298
    %v386 = vpop.f32.mrb[0].mxu0
    %v387 = vadd.f32 0.0, %v386
    %v388 = vpop.f32.mrb[0].mxu0
    %v389 = vadd.f32 0.0, %v388
    %v390 = vpop.f32.mrb[0].mxu0
    %v391 = vadd.f32 0.0, %v390
    %v392 = vpop.f32.mrb[0].mxu0
    %v393 = vadd.f32 0.0, %v392
    %394 = vmatprep.mubr.bf16.mxu0 0
    %395 = vmatmul.mubr.bf16.gmra.mrb[0].mxu0 %v301
    %v396 = vpop.f32.mrb[0].mxu0
    %v397 = vadd.f32 0.0, %v396
    %v398 = vpop.f32.mrb[0].mxu0
    %v399 = vadd.f32 0.0, %v398
    %v400 = vpop.f32.mrb[0].mxu0
    %v401 = vadd.f32 0.0, %v400
    %v402 = vpop.f32.mrb[0].mxu0
    %v403 = vadd.f32 0.0, %v402
    %404 = vmatprep.mubr.bf16.mxu0 0
    %405 = vmatmul.mubr.bf16.gmra.mrb[0].mxu0 %v304
    %v406 = vpop.f32.mrb[0].mxu0
    %v407 = vadd.f32 0.0, %v406
    %v408 = vpop.f32.mrb[0].mxu0
    %v409 = vadd.f32 0.0, %v408
    %v410 = vpop.f32.mrb[0].mxu0
    %v411 = vadd.f32 0.0, %v410
    %v412 = vpop.f32.mrb[0].mxu0
    %v413 = vadd.f32 0.0, %v412
    %414 = vmatprep.mubr.bf16.mxu0 0
    %415 = vmatmul.mubr.bf16.gmra.mrb[0].mxu0 %v307
    %v416 = vpop.f32.mrb[0].mxu0
    %v417 = vadd.f32 0.0, %v416
    %v418 = vpop.f32.mrb[0].mxu0
    %v419 = vadd.f32 0.0, %v418
    %v420 = vpop.f32.mrb[0].mxu0
    %v421 = vadd.f32 0.0, %v420
    %v422 = vpop.f32.mrb[0].mxu0
    %v423 = vadd.f32 0.0, %v422
    %424 = vmatprep.mubr.bf16.mxu0 0
    %425 = vmatmul.mubr.bf16.gmra.mrb[0].mxu0 %v310
    %v426 = vpop.f32.mrb[0].mxu0
    %v427 = vadd.f32 0.0, %v426
    %v428 = vpop.f32.mrb[0].mxu0
    %v429 = vadd.f32 0.0, %v428
    %v430 = vpop.f32.mrb[0].mxu0
    %v431 = vadd.f32 0.0, %v430
    %v432 = vpop.f32.mrb[0].mxu0
    %v433 = vadd.f32 0.0, %v432
    %434 = vmatprep.mubr.bf16.mxu0 0
    %435 = vmatmul.mubr.bf16.gmra.mrb[0].mxu0 %v313
    %v436 = vpop.f32.mrb[0].mxu0
    %v437 = vadd.f32 0.0, %v436
    %v438 = vpop.f32.mrb[0].mxu0
    %v439 = vadd.f32 0.0, %v438
    %v440 = vpop.f32.mrb[0].mxu0
    %v441 = vadd.f32 0.0, %v440
    %v442 = vpop.f32.mrb[0].mxu0
    %v443 = vadd.f32 0.0, %v442
    %444 = vmatprep.mubr.bf16.mxu0 0
    %445 = vmatmul.mubr.bf16.gmra.mrb[0].mxu0 %v316
    %v446 = vpop.f32.mrb[0].mxu0
    %v447 = vadd.f32 0.0, %v446
    %v448 = vpop.f32.mrb[0].mxu0
    %v449 = vadd.f32 0.0, %v448
    %v450 = vpop.f32.mrb[0].mxu0
    %v451 = vadd.f32 0.0, %v450
    %v452 = vpop.f32.mrb[0].mxu0
    %v453 = vadd.f32 0.0, %v452
    %454 = vmatprep.mubr.bf16.mxu0 0
    %455 = vmatmul.mubr.bf16.gmra.mrb[0].mxu0 %v319
    %v456 = vpop.f32.mrb[0].mxu0
    %v457 = vadd.f32 0.0, %v456
    %v458 = vpop.f32.mrb[0].mxu0
    %v459 = vadd.f32 0.0, %v458
    %v460 = vpop.f32.mrb[0].mxu0
    %v461 = vadd.f32 0.0, %v460
    %v462 = vpop.f32.mrb[0].mxu0
    %v463 = vadd.f32 0.0, %v462
    %464 = vmatprep.mubr.bf16.mxu0 0
    %465 = vmatmul.mubr.bf16.gmra.mrb[0].mxu0 %v322
    %v466 = vpop.f32.mrb[0].mxu0
    %v467 = vadd.f32 0.0, %v466
    %v468 = vpop.f32.mrb[0].mxu0
    %v469 = vadd.f32 0.0, %v468
    %v470 = vpop.f32.mrb[0].mxu0
    %v471 = vadd.f32 0.0, %v470
    %v472 = vpop.f32.mrb[0].mxu0
    %v473 = vadd.f32 0.0, %v472
    %474 = vmatprep.mubr.bf16.mxu0 0
    %475 = vmatmul.mubr.bf16.gmra.mrb[0].mxu0 %v325
    %v476 = vpop.f32.mrb[0].mxu0
    %v477 = vadd.f32 0.0, %v476
    %v478 = vpop.f32.mrb[0].mxu0
    %v479 = vadd.f32 0.0, %v478
    %v480 = vpop.f32.mrb[0].mxu0
    %v481 = vadd.f32 0.0, %v480
    %v482 = vpop.f32.mrb[0].mxu0
    %v483 = vadd.f32 0.0, %v482
    %484 = vmatprep.mubr.bf16.mxu0 0
    %485 = vmatmul.mubr.bf16.gmra.mrb[0].mxu0 %v328
    %v486 = vpop.f32.mrb[0].mxu0
    %v487 = vadd.f32 0.0, %v486
    %v488 = vpop.f32.mrb[0].mxu0
    %v489 = vadd.f32 0.0, %v488
    %v490 = vpop.f32.mrb[0].mxu0
    %v491 = vadd.f32 0.0, %v490
    %v492 = vpop.f32.mrb[0].mxu0
    %v493 = vadd.f32 0.0, %v492
    %494 = vmatprep.mubr.bf16.mxu0 0
    %495 = vmatmul.mubr.bf16.gmra.mrb[0].mxu0 %v331
    %v496 = vpop.f32.mrb[0].mxu0
    %v497 = vadd.f32 0.0, %v496
    %v498 = vpop.f32.mrb[0].mxu0
    %v499 = vadd.f32 0.0, %v498
    %v500 = vpop.f32.mrb[0].mxu0
    %v501 = vadd.f32 0.0, %v500
    %v502 = vpop.f32.mrb[0].mxu0
    %v503 = vadd.f32 0.0, %v502
    %504 = vmatprep.mubr.bf16.mxu0 0
    %505 = vmatmul.mubr.bf16.gmra.mrb[0].mxu0 %v334
    %v506 = vpop.f32.mrb[0].mxu0
    %v507 = vadd.f32 0.0, %v506
    %v508 = vpop.f32.mrb[0].mxu0
    %v509 = vadd.f32 0.0, %v508
    %v510 = vpop.f32.mrb[0].mxu0
    %v511 = vadd.f32 0.0, %v510
    %v512 = vpop.f32.mrb[0].mxu0
    %v513 = vadd.f32 0.0, %v512
    %514 = vmatprep.mubr.bf16.mxu0 0
    %515 = vmatmul.mubr.bf16.gmra.mrb[0].mxu0 %v337
    %v516 = vpop.f32.mrb[0].mxu0
    %v517 = vadd.f32 0.0, %v516
    %v518 = vpop.f32.mrb[0].mxu0
    %v519 = vadd.f32 0.0, %v518
    %v520 = vpop.f32.mrb[0].mxu0
    %v521 = vadd.f32 0.0, %v520
    %v522 = vpop.f32.mrb[0].mxu0
    %v523 = vadd.f32 0.0, %v522
    %524 = vmatprep.mubr.bf16.mxu0 0
    %525 = vmatmul.mubr.bf16.gmra.mrb[0].mxu0 %v340
    %v526 = vpop.f32.mrb[0].mxu0
    %v527 = vadd.f32 0.0, %v526
    %v528 = vpop.f32.mrb[0].mxu0
    %v529 = vadd.f32 0.0, %v528
    %v530 = vpop.f32.mrb[0].mxu0
    %v531 = vadd.f32 0.0, %v530
    %v532 = vpop.f32.mrb[0].mxu0
    %v533 = vadd.f32 0.0, %v532
    %534 = vdwg.mxu0
    %v535 = vadd.f32 %v81, %v377
    %v536 = vadd.f32 %v82, %v379
    %v537 = vadd.f32 %v83, %v381
    %v538 = vadd.f32 %v84, %v383
    %v539 = vadd.f32 %v85, %v387
    %v540 = vadd.f32 %v86, %v389
    %v541 = vadd.f32 %v87, %v391
    %v542 = vadd.f32 %v88, %v393
    %v543 = vadd.f32 %v89, %v397
    %v544 = vadd.f32 %v90, %v399
    %v545 = vadd.f32 %v91, %v401
    %v546 = vadd.f32 %v92, %v403
    %v547 = vadd.f32 %v93, %v407
    %v548 = vadd.f32 %v94, %v409
    %v549 = vadd.f32 %v95, %v411
    %v550 = vadd.f32 %v96, %v413
    %v551 = vadd.f32 %v97, %v417
    %v552 = vadd.f32 %v98, %v419
    %v553 = vadd.f32 %v99, %v421
    %v554 = vadd.f32 %v100, %v423
    %v555 = vadd.f32 %v101, %v427
    %v556 = vadd.f32 %v102, %v429
    %v557 = vadd.f32 %v103, %v431
    %v558 = vadd.f32 %v104, %v433
    %v559 = vadd.f32 %v105, %v437
    %v560 = vadd.f32 %v106, %v439
    %v561 = vadd.f32 %v107, %v441
    %v562 = vadd.f32 %v108, %v443
    %v563 = vadd.f32 %v109, %v447
    %v564 = vadd.f32 %v110, %v449
    %v565 = vadd.f32 %v111, %v451
    %v566 = vadd.f32 %v112, %v453
    %v567 = vadd.f32 %v113, %v457
    %v568 = vadd.f32 %v114, %v459
    %v569 = vadd.f32 %v115, %v461
    %v570 = vadd.f32 %v116, %v463
    %v571 = vadd.f32 %v117, %v467
    %v572 = vadd.f32 %v118, %v469
    %v573 = vadd.f32 %v119, %v471
    %v574 = vadd.f32 %v120, %v473
    %v575 = vadd.f32 %v121, %v477
    %v576 = vadd.f32 %v122, %v479
    %v577 = vadd.f32 %v123, %v481
    %v578 = vadd.f32 %v124, %v483
    %v579 = vadd.f32 %v125, %v487
    %v580 = vadd.f32 %v126, %v489
    %v581 = vadd.f32 %v127, %v491
    %v582 = vadd.f32 %v128, %v493
    %v583 = vadd.f32 %v129, %v497
    %v584 = vadd.f32 %v130, %v499
    %v585 = vadd.f32 %v131, %v501
    %v586 = vadd.f32 %v132, %v503
    %v587 = vadd.f32 %v133, %v507
    %v588 = vadd.f32 %v134, %v509
    %v589 = vadd.f32 %v135, %v511
    %v590 = vadd.f32 %v136, %v513
    %v591 = vadd.f32 %v137, %v517
    %v592 = vadd.f32 %v138, %v519
    %v593 = vadd.f32 %v139, %v521
    %v594 = vadd.f32 %v140, %v523
    %v595 = vadd.f32 %v141, %v527
    %v596 = vadd.f32 %v142, %v529
    %v597 = vadd.f32 %v143, %v531
    %v598 = vadd.f32 %v144, %v533
    %599 = vst [vmem:[#allocation2] sm:$0xff] %v535
    %600 = vst [vmem:[#allocation2 + $0x8] sm:$0xff] %v536
    %601 = vst [vmem:[#allocation2 + $0x10] sm:$0xff] %v537
    %602 = vst [vmem:[#allocation2 + $0x18] sm:$0xff] %v538
    %603 = vst [vmem:[#allocation2 + $0x20] sm:$0xff] %v539
    %604 = vst [vmem:[#allocation2 + $0x28] sm:$0xff] %v540
    %605 = vst [vmem:[#allocation2 + $0x30] sm:$0xff] %v541
    %606 = vst [vmem:[#allocation2 + $0x38] sm:$0xff] %v542
    %607 = vst [vmem:[#allocation2 + $0x40] sm:$0xff] %v543
    %608 = vst [vmem:[#allocation2 + $0x48] sm:$0xff] %v544
    %609 = vst [vmem:[#allocation2 + $0x50] sm:$0xff] %v545
    %610 = vst [vmem:[#allocation2 + $0x58] sm:$0xff] %v546
    %611 = vst [vmem:[#allocation2 + $0x60] sm:$0xff] %v547
    %612 = vst [vmem:[#allocation2 + $0x68] sm:$0xff] %v548
    %613 = vst [vmem:[#allocation2 + $0x70] sm:$0xff] %v549
    %614 = vst [vmem:[#allocation2 + $0x78] sm:$0xff] %v550
    %615 = vst [vmem:[#allocation2 + $0x80] sm:$0xff] %v551
    %616 = vst [vmem:[#allocation2 + $0x88] sm:$0xff] %v552
    %617 = vst [vmem:[#allocation2 + $0x90] sm:$0xff] %v553
    %618 = vst [vmem:[#allocation2 + $0x98] sm:$0xff] %v554
    %619 = vst [vmem:[#allocation2 + $0xa0] sm:$0xff] %v555
    %620 = vst [vmem:[#allocation2 + $0xa8] sm:$0xff] %v556
    %621 = vst [vmem:[#allocation2 + $0xb0] sm:$0xff] %v557
    %622 = vst [vmem:[#allocation2 + $0xb8] sm:$0xff] %v558
    %623 = vst [vmem:[#allocation2 + $0xc0] sm:$0xff] %v559
    %624 = vst [vmem:[#allocation2 + $0xc8] sm:$0xff] %v560
    %625 = vst [vmem:[#allocation2 + $0xd0] sm:$0xff] %v561
    %626 = vst [vmem:[#allocation2 + $0xd8] sm:$0xff] %v562
    %627 = vst [vmem:[#allocation2 + $0xe0] sm:$0xff] %v563
    %628 = vst [vmem:[#allocation2 + $0xe8] sm:$0xff] %v564
    %629 = vst [vmem:[#allocation2 + $0xf0] sm:$0xff] %v565
    %630 = vst [vmem:[#allocation2 + $0xf8] sm:$0xff] %v566
    %631 = vst [vmem:[#allocation2 + $0x100] sm:$0xff] %v567
    %632 = vst [vmem:[#allocation2 + $0x108] sm:$0xff] %v568
    %633 = vst [vmem:[#allocation2 + $0x110] sm:$0xff] %v569
    %634 = vst [vmem:[#allocation2 + $0x118] sm:$0xff] %v570
    %635 = vst [vmem:[#allocation2 + $0x120] sm:$0xff] %v571
    %636 = vst [vmem:[#allocation2 + $0x128] sm:$0xff] %v572
    %637 = vst [vmem:[#allocation2 + $0x130] sm:$0xff] %v573
    %638 = vst [vmem:[#allocation2 + $0x138] sm:$0xff] %v574
    %639 = vst [vmem:[#allocation2 + $0x140] sm:$0xff] %v575
    %640 = vst [vmem:[#allocation2 + $0x148] sm:$0xff] %v576
    %641 = vst [vmem:[#allocation2 + $0x150] sm:$0xff] %v577
    %642 = vst [vmem:[#allocation2 + $0x158] sm:$0xff] %v578
    %643 = vst [vmem:[#allocation2 + $0x160] sm:$0xff] %v579
    %644 = vst [vmem:[#allocation2 + $0x168] sm:$0xff] %v580
    %645 = vst [vmem:[#allocation2 + $0x170] sm:$0xff] %v581
    %646 = vst [vmem:[#allocation2 + $0x178] sm:$0xff] %v582
    %647 = vst [vmem:[#allocation2 + $0x180] sm:$0xff] %v583
    %648 = vst [vmem:[#allocation2 + $0x188] sm:$0xff] %v584
    %649 = vst [vmem:[#allocation2 + $0x190] sm:$0xff] %v585
    %650 = vst [vmem:[#allocation2 + $0x198] sm:$0xff] %v586
    %651 = vst [vmem:[#allocation2 + $0x1a0] sm:$0xff] %v587
    %652 = vst [vmem:[#allocation2 + $0x1a8] sm:$0xff] %v588
    %653 = vst [vmem:[#allocation2 + $0x1b0] sm:$0xff] %v589
    %654 = vst [vmem:[#allocation2 + $0x1b8] sm:$0xff] %v590
    %655 = vst [vmem:[#allocation2 + $0x1c0] sm:$0xff] %v591
    %656 = vst [vmem:[#allocation2 + $0x1c8] sm:$0xff] %v592
    %657 = vst [vmem:[#allocation2 + $0x1d0] sm:$0xff] %v593
    %658 = vst [vmem:[#allocation2 + $0x1d8] sm:$0xff] %v594
    %659 = vst [vmem:[#allocation2 + $0x1e0] sm:$0xff] %v595
    %660 = vst [vmem:[#allocation2 + $0x1e8] sm:$0xff] %v596
    %661 = vst [vmem:[#allocation2 + $0x1f0] sm:$0xff] %v597
    %662 = vst [vmem:[#allocation2 + $0x1f8] sm:$0xff] %v598
    // Predicated region
    $region14: #{tpu_custom_call.1} parent=1 // pred_check
      %p663 = pneg %p13
    $region15: #{tpu_custom_call.1} parent=1 // pred_check_branch
      %665 = sbr.rel (%p663) target = $region17
    $region16: #{tpu_custom_call.1} parent=1 // pred_region
      %v666 = vld [vmem:[#allocation2] sm:$0xff]
      %v667 = vld [vmem:[#allocation2 + $0x8] sm:$0xff]
      %v668 = vld [vmem:[#allocation2 + $0x10] sm:$0xff]
      %v669 = vld [vmem:[#allocation2 + $0x18] sm:$0xff]
      %v670 = vld [vmem:[#allocation2 + $0x20] sm:$0xff]
      %v671 = vld [vmem:[#allocation2 + $0x28] sm:$0xff]
      %v672 = vld [vmem:[#allocation2 + $0x30] sm:$0xff]
      %v673 = vld [vmem:[#allocation2 + $0x38] sm:$0xff]
      %v674 = vld [vmem:[#allocation2 + $0x40] sm:$0xff]
      %v675 = vld [vmem:[#allocation2 + $0x48] sm:$0xff]
      %v676 = vld [vmem:[#allocation2 + $0x50] sm:$0xff]
      %v677 = vld [vmem:[#allocation2 + $0x58] sm:$0xff]
      %v678 = vld [vmem:[#allocation2 + $0x60] sm:$0xff]
      %v679 = vld [vmem:[#allocation2 + $0x68] sm:$0xff]
      %v680 = vld [vmem:[#allocation2 + $0x70] sm:$0xff]
      %v681 = vld [vmem:[#allocation2 + $0x78] sm:$0xff]
      %v682 = vld [vmem:[#allocation2 + $0x80] sm:$0xff]
      %v683 = vld [vmem:[#allocation2 + $0x88] sm:$0xff]
      %v684 = vld [vmem:[#allocation2 + $0x90] sm:$0xff]
      %v685 = vld [vmem:[#allocation2 + $0x98] sm:$0xff]
      %v686 = vld [vmem:[#allocation2 + $0xa0] sm:$0xff]
      %v687 = vld [vmem:[#allocation2 + $0xa8] sm:$0xff]
      %v688 = vld [vmem:[#allocation2 + $0xb0] sm:$0xff]
      %v689 = vld [vmem:[#allocation2 + $0xb8] sm:$0xff]
      %v690 = vld [vmem:[#allocation2 + $0xc0] sm:$0xff]
      %v691 = vld [vmem:[#allocation2 + $0xc8] sm:$0xff]
      %v692 = vld [vmem:[#allocation2 + $0xd0] sm:$0xff]
      %v693 = vld [vmem:[#allocation2 + $0xd8] sm:$0xff]
      %v694 = vld [vmem:[#allocation2 + $0xe0] sm:$0xff]
      %v695 = vld [vmem:[#allocation2 + $0xe8] sm:$0xff]
      %v696 = vld [vmem:[#allocation2 + $0xf0] sm:$0xff]
      %v697 = vld [vmem:[#allocation2 + $0xf8] sm:$0xff]
      %v698 = vld [vmem:[#allocation2 + $0x100] sm:$0xff]
      %v699 = vld [vmem:[#allocation2 + $0x108] sm:$0xff]
      %v700 = vld [vmem:[#allocation2 + $0x110] sm:$0xff]
      %v701 = vld [vmem:[#allocation2 + $0x118] sm:$0xff]
      %v702 = vld [vmem:[#allocation2 + $0x120] sm:$0xff]
      %v703 = vld [vmem:[#allocation2 + $0x128] sm:$0xff]
      %v704 = vld [vmem:[#allocation2 + $0x130] sm:$0xff]
      %v705 = vld [vmem:[#allocation2 + $0x138] sm:$0xff]
      %v706 = vld [vmem:[#allocation2 + $0x140] sm:$0xff]
      %v707 = vld [vmem:[#allocation2 + $0x148] sm:$0xff]
      %v708 = vld [vmem:[#allocation2 + $0x150] sm:$0xff]
      %v709 = vld [vmem:[#allocation2 + $0x158] sm:$0xff]
      %v710 = vld [vmem:[#allocation2 + $0x160] sm:$0xff]
      %v711 = vld [vmem:[#allocation2 + $0x168] sm:$0xff]
      %v712 = vld [vmem:[#allocation2 + $0x170] sm:$0xff]
      %v713 = vld [vmem:[#allocation2 + $0x178] sm:$0xff]
      %v714 = vld [vmem:[#allocation2 + $0x180] sm:$0xff]
      %v715 = vld [vmem:[#allocation2 + $0x188] sm:$0xff]
      %v716 = vld [vmem:[#allocation2 + $0x190] sm:$0xff]
      %v717 = vld [vmem:[#allocation2 + $0x198] sm:$0xff]
      %v718 = vld [vmem:[#allocation2 + $0x1a0] sm:$0xff]
      %v719 = vld [vmem:[#allocation2 + $0x1a8] sm:$0xff]
      %v720 = vld [vmem:[#allocation2 + $0x1b0] sm:$0xff]
      %v721 = vld [vmem:[#allocation2 + $0x1b8] sm:$0xff]
      %v722 = vld [vmem:[#allocation2 + $0x1c0] sm:$0xff]
      %v723 = vld [vmem:[#allocation2 + $0x1c8] sm:$0xff]
      %v724 = vld [vmem:[#allocation2 + $0x1d0] sm:$0xff]
      %v725 = vld [vmem:[#allocation2 + $0x1d8] sm:$0xff]
      %v726 = vld [vmem:[#allocation2 + $0x1e0] sm:$0xff]
      %v727 = vld [vmem:[#allocation2 + $0x1e8] sm:$0xff]
      %v728 = vld [vmem:[#allocation2 + $0x1f0] sm:$0xff]
      %v729 = vld [vmem:[#allocation2 + $0x1f8] sm:$0xff]
      %v730 = vpack.c.bf16 %v668, %v666
      %v731 = vpack.c.bf16 %v669, %v667
      %v732 = vpack.c.bf16 %v672, %v670
      %v733 = vpack.c.bf16 %v673, %v671
      %v734 = vpack.c.bf16 %v676, %v674
      %v735 = vpack.c.bf16 %v677, %v675
      %v736 = vpack.c.bf16 %v680, %v678
      %v737 = vpack.c.bf16 %v681, %v679
      %v738 = vpack.c.bf16 %v684, %v682
      %v739 = vpack.c.bf16 %v685, %v683
      %v740 = vpack.c.bf16 %v688, %v686
      %v741 = vpack.c.bf16 %v689, %v687
      %v742 = vpack.c.bf16 %v692, %v690
      %v743 = vpack.c.bf16 %v693, %v691
      %v744 = vpack.c.bf16 %v696, %v694
      %v745 = vpack.c.bf16 %v697, %v695
      %v746 = vpack.c.bf16 %v700, %v698
      %v747 = vpack.c.bf16 %v701, %v699
      %v748 = vpack.c.bf16 %v704, %v702
      %v749 = vpack.c.bf16 %v705, %v703
      %v750 = vpack.c.bf16 %v708, %v706
      %v751 = vpack.c.bf16 %v709, %v707
      %v752 = vpack.c.bf16 %v712, %v710
      %v753 = vpack.c.bf16 %v713, %v711
      %v754 = vpack.c.bf16 %v716, %v714
      %v755 = vpack.c.bf16 %v717, %v715
      %v756 = vpack.c.bf16 %v720, %v718
      %v757 = vpack.c.bf16 %v721, %v719
      %v758 = vpack.c.bf16 %v724, %v722
      %v759 = vpack.c.bf16 %v725, %v723
      %v760 = vpack.c.bf16 %v728, %v726
      %v761 = vpack.c.bf16 %v729, %v727
      %v794 = vunpack.c.l.b16 %v730
      %v795 = vunpack.c.l.b16 %v731
      %v796 = vunpack.c.h.b16 %v730
      %v797 = vunpack.c.h.b16 %v731
      %v798 = vunpack.c.l.b16 %v732
      %v799 = vunpack.c.l.b16 %v733
      %v800 = vunpack.c.h.b16 %v732
      %v801 = vunpack.c.h.b16 %v733
      %v802 = vunpack.c.l.b16 %v734
      %v803 = vunpack.c.l.b16 %v735
      %v804 = vunpack.c.h.b16 %v734
      %v805 = vunpack.c.h.b16 %v735
      %v806 = vunpack.c.l.b16 %v736
      %v807 = vunpack.c.l.b16 %v737
      %v808 = vunpack.c.h.b16 %v736
      %v809 = vunpack.c.h.b16 %v737
      %v810 = vunpack.c.l.b16 %v738
      %v811 = vunpack.c.l.b16 %v739
      %v812 = vunpack.c.h.b16 %v738
      %v813 = vunpack.c.h.b16 %v739
      %v814 = vunpack.c.l.b16 %v740
      %v815 = vunpack.c.l.b16 %v741
      %v816 = vunpack.c.h.b16 %v740
      %v817 = vunpack.c.h.b16 %v741
      %v818 = vunpack.c.l.b16 %v742
      %v819 = vunpack.c.l.b16 %v743
      %v820 = vunpack.c.h.b16 %v742
      %v821 = vunpack.c.h.b16 %v743
      %v822 = vunpack.c.l.b16 %v744
      %v823 = vunpack.c.l.b16 %v745
      %v824 = vunpack.c.h.b16 %v744
      %v825 = vunpack.c.h.b16 %v745
      %v826 = vunpack.c.l.b16 %v746
      %v827 = vunpack.c.l.b16 %v747
      %v828 = vunpack.c.h.b16 %v746
      %v829 = vunpack.c.h.b16 %v747
      %v830 = vunpack.c.l.b16 %v748
      %v831 = vunpack.c.l.b16 %v749
      %v832 = vunpack.c.h.b16 %v748
      %v833 = vunpack.c.h.b16 %v749
      %v834 = vunpack.c.l.b16 %v750
      %v835 = vunpack.c.l.b16 %v751
      %v836 = vunpack.c.h.b16 %v750
      %v837 = vunpack.c.h.b16 %v751
      %v838 = vunpack.c.l.b16 %v752
      %v839 = vunpack.c.l.b16 %v753
      %v840 = vunpack.c.h.b16 %v752
      %v841 = vunpack.c.h.b16 %v753
      %v842 = vunpack.c.l.b16 %v754
      %v843 = vunpack.c.l.b16 %v755
      %v844 = vunpack.c.h.b16 %v754
      %v845 = vunpack.c.h.b16 %v755
      %v846 = vunpack.c.l.b16 %v756
      %v847 = vunpack.c.l.b16 %v757
      %v848 = vunpack.c.h.b16 %v756
      %v849 = vunpack.c.h.b16 %v757
      %v850 = vunpack.c.l.b16 %v758
      %v851 = vunpack.c.l.b16 %v759
      %v852 = vunpack.c.h.b16 %v758
      %v853 = vunpack.c.h.b16 %v759
      %v854 = vunpack.c.l.b16 %v760
      %v855 = vunpack.c.l.b16 %v761
      %v856 = vunpack.c.h.b16 %v760
      %v857 = vunpack.c.h.b16 %v761
      %v858 = vpack.c.b16 %v795, %v794
      %v859 = vpack.c.b16 %v797, %v796
      %v860 = vpack.c.b16 %v799, %v798
      %v861 = vpack.c.b16 %v801, %v800
      %v862 = vpack.c.b16 %v803, %v802
      %v863 = vpack.c.b16 %v805, %v804
      %v864 = vpack.c.b16 %v807, %v806
      %v865 = vpack.c.b16 %v809, %v808
      %v866 = vpack.c.b16 %v811, %v810
      %v867 = vpack.c.b16 %v813, %v812
      %v868 = vpack.c.b16 %v815, %v814
      %v869 = vpack.c.b16 %v817, %v816
      %v870 = vpack.c.b16 %v819, %v818
      %v871 = vpack.c.b16 %v821, %v820
      %v872 = vpack.c.b16 %v823, %v822
      %v873 = vpack.c.b16 %v825, %v824
      %v874 = vpack.c.b16 %v827, %v826
      %v875 = vpack.c.b16 %v829, %v828
      %v876 = vpack.c.b16 %v831, %v830
      %v877 = vpack.c.b16 %v833, %v832
      %v878 = vpack.c.b16 %v835, %v834
      %v879 = vpack.c.b16 %v837, %v836
      %v880 = vpack.c.b16 %v839, %v838
      %v881 = vpack.c.b16 %v841, %v840
      %v882 = vpack.c.b16 %v843, %v842
      %v883 = vpack.c.b16 %v845, %v844
      %v884 = vpack.c.b16 %v847, %v846
      %v885 = vpack.c.b16 %v849, %v848
      %v886 = vpack.c.b16 %v851, %v850
      %v887 = vpack.c.b16 %v853, %v852
      %v888 = vpack.c.b16 %v855, %v854
      %v889 = vpack.c.b16 %v857, %v856
      %922 = vst [vmem:[#allocation3] sm:$0xff] %v858
      %923 = vst [vmem:[#allocation3 + $0x8] sm:$0xff] %v859
      %924 = vst [vmem:[#allocation3 + $0x10] sm:$0xff] %v860
      %925 = vst [vmem:[#allocation3 + $0x18] sm:$0xff] %v861
      %926 = vst [vmem:[#allocation3 + $0x20] sm:$0xff] %v862
      %927 = vst [vmem:[#allocation3 + $0x28] sm:$0xff] %v863
      %928 = vst [vmem:[#allocation3 + $0x30] sm:$0xff] %v864
      %929 = vst [vmem:[#allocation3 + $0x38] sm:$0xff] %v865
      %930 = vst [vmem:[#allocation3 + $0x40] sm:$0xff] %v866
      %931 = vst [vmem:[#allocation3 + $0x48] sm:$0xff] %v867
      %932 = vst [vmem:[#allocation3 + $0x50] sm:$0xff] %v868
      %933 = vst [vmem:[#allocation3 + $0x58] sm:$0xff] %v869
      %934 = vst [vmem:[#allocation3 + $0x60] sm:$0xff] %v870
      %935 = vst [vmem:[#allocation3 + $0x68] sm:$0xff] %v871
      %936 = vst [vmem:[#allocation3 + $0x70] sm:$0xff] %v872
      %937 = vst [vmem:[#allocation3 + $0x78] sm:$0xff] %v873
      %938 = vst [vmem:[#allocation3 + $0x80] sm:$0xff] %v874
      %939 = vst [vmem:[#allocation3 + $0x88] sm:$0xff] %v875
      %940 = vst [vmem:[#allocation3 + $0x90] sm:$0xff] %v876
      %941 = vst [vmem:[#allocation3 + $0x98] sm:$0xff] %v877
      %942 = vst [vmem:[#allocation3 + $0xa0] sm:$0xff] %v878
      %943 = vst [vmem:[#allocation3 + $0xa8] sm:$0xff] %v879
      %944 = vst [vmem:[#allocation3 + $0xb0] sm:$0xff] %v880
      %945 = vst [vmem:[#allocation3 + $0xb8] sm:$0xff] %v881
      %946 = vst [vmem:[#allocation3 + $0xc0] sm:$0xff] %v882
      %947 = vst [vmem:[#allocation3 + $0xc8] sm:$0xff] %v883
      %948 = vst [vmem:[#allocation3 + $0xd0] sm:$0xff] %v884
      %949 = vst [vmem:[#allocation3 + $0xd8] sm:$0xff] %v885
      %950 = vst [vmem:[#allocation3 + $0xe0] sm:$0xff] %v886
      %951 = vst [vmem:[#allocation3 + $0xe8] sm:$0xff] %v887
      %952 = vst [vmem:[#allocation3 + $0xf0] sm:$0xff] %v888
      %953 = vst [vmem:[#allocation3 + $0xf8] sm:$0xff] %v889
    $region17: #{tpu_custom_call.1} parent=1 // pred_fallthru
      _
    // Predicated region
    $region18: #{tpu_custom_call.1} parent=1 // pred_check
      _
    $region19: #{tpu_custom_call.1} parent=1 // pred_check_branch
      %955 = sbr.rel (0) target = $region21
    $region20: #{tpu_custom_call.1} parent=1 // pred_region
      %s957 = ssub.s32 4096, 4096
      %958 = vsyncadd [#allocation4], %s957
      %s959 = sshll.u32 [#allocation3], 4
      %s960 = int_to_ptr.vmem [resolvable:$true] %s959
      %965 = dma.vmem_to_hbm [thread:$0]  %s960, 4096, %s2, [#allocation4], 128, 128, 8
    $region21: #{tpu_custom_call.1} parent=1 // pred_fallthru
      _
    // Predicated region
    $region22: #{tpu_custom_call.1} parent=1 // pred_check
      _
    $region23: #{tpu_custom_call.1} parent=1 // pred_check_branch
      %967 = sbr.rel (0) target = $region25
    $region24: #{tpu_custom_call.1} parent=1 // pred_region
      %968 = dma.done [#allocation4], 4096
    $region25: #{tpu_custom_call.1} parent=1 // pred_fallthru
      _
    %969 = vsyncpa [#allocation4], 1

</llo_original>
